<compile_context>
chip_gen: v7x
topology: tpu7x:2x2x1
jax: 0.10.0
libtpu: 0.0.40
codegen_flags: <defaults>
</compile_context>

<pallas_src>
import math
import functools

import jax
import jax.numpy as jnp
from jax import lax
from jax.experimental import pallas as pl
from jax.experimental.pallas import tpu as pltpu


# ----------------------------------------------------------------------------
# helpers
# ----------------------------------------------------------------------------
def _sublane_align(dtype):
    """Native sublane tiling for a dtype: 8 (f32), 16 (bf16), 32 (int8)."""
    return max(8, 32 // jnp.dtype(dtype).itemsize)


def _fit_tile(dim, preferred, align=1):
    """Largest divisor of `dim` that is <= `preferred` and a multiple of `align`.

    Keeps strict sub-blocks legal w.r.t. the (8,128)/dtype tiling. Falls back
    to the full extent only when no aligned divisor exists (full-extent blocks
    are always legal), instead of silently producing huge unaligned blocks.
    """
    preferred = min(preferred, dim)
    if dim <= preferred:
        return dim
    t = (preferred // align) * align
    while t >= align:
        if dim % t == 0:
            return t
        t -= align
    return dim


# ----------------------------------------------------------------------------
# Tiled linear:  y = x @ W^T + b      (PyTorch nn.Linear semantics)
# ----------------------------------------------------------------------------
def _linear_kernel(x_ref, w_ref, b_ref, o_ref, acc_ref):
    # x_ref: (tm, tk)  w_ref: (tk, tn) (weight pre-transposed in the wrapper)
    # b_ref: (1, tn)   o_ref: (tm, tn) acc_ref: (tm, tn) f32 scratch
    k = pl.program_id(2)

    @pl.when(k == 0)
    def _():
        acc_ref[...] = jnp.zeros_like(acc_ref)

    acc_ref[...] += lax.dot_general(
        x_ref[...], w_ref[...],
        dimension_numbers=(((1,), (0,)), ((), ())),
        preferred_element_type=jnp.float32)

    @pl.when(k == pl.num_programs(2) - 1)
    def _():
        o_ref[...] = (acc_ref[...] + b_ref[...]).astype(o_ref.dtype)


def pallas_linear(x, w, b, *, matmul_dtype=None, out_dtype=None,
                  tm=512, tn=256, tk=512, vmem_limit_bytes=None):
    """x: (..., D_in), w: (D_out, D_in), b: (D_out,) -> (..., D_out)."""
    *lead, d_in = x.shape
    d_out = w.shape[0]
    m = int(math.prod(lead)) if lead else 1
    out_dtype = out_dtype or x.dtype

    x2 = x.reshape(m, d_in)
    wt = w.T                                   # pre-transpose once, outside the kernel
    if matmul_dtype is not None:
        x2 = x2.astype(matmul_dtype)
        wt = wt.astype(matmul_dtype)
    b2 = b.reshape(1, d_out).astype(jnp.float32)

    tm = _fit_tile(m, tm, align=_sublane_align(x2.dtype))
    tn = _fit_tile(d_out, tn, align=128)
    tk = _fit_tile(d_in, tk, align=128)
    grid = (m // tm, d_out // tn, d_in // tk)

    # HBM traffic: x is re-read once per output-column tile, w once per row tile.
    flops = 2 * m * d_out * d_in
    bytes_accessed = (x2.size * x2.dtype.itemsize * max(1, d_out // tn)
                      + wt.size * wt.dtype.itemsize * max(1, m // tm)
                      + b2.size * 4 + m * d_out * jnp.dtype(out_dtype).itemsize)

    # TODO(synk): sweep pipeline_mode=pl.Buffered(3) on the x/w specs for the
    # weight-streaming (small-M) projections; fp8 weights on v7x where allowed.
    y = pl.pallas_call(
        _linear_kernel,
        out_shape=jax.ShapeDtypeStruct((m, d_out), out_dtype),
        grid=grid,
        in_specs=[
            pl.BlockSpec((tm, tk), lambda i, j, kk: (i, kk)),
            pl.BlockSpec((tk, tn), lambda i, j, kk: (kk, j)),
            pl.BlockSpec((1, tn), lambda i, j, kk: (0, j)),
        ],
        out_specs=pl.BlockSpec((tm, tn), lambda i, j, kk: (i, j)),
        scratch_shapes=[pltpu.VMEM((tm, tn), jnp.float32)],
        compiler_params=pltpu.CompilerParams(
            dimension_semantics=("parallel", "parallel", "arbitrary"),
            vmem_limit_bytes=vmem_limit_bytes),
        cost_estimate=pl.CostEstimate(flops=flops, transcendentals=0,
                                      bytes_accessed=bytes_accessed),
    )(x2, wt, b2)
    return y.reshape(*lead, d_out)


# ----------------------------------------------------------------------------
# Flash-style multi-head attention on the merged-head (B, S, D) layout
# ----------------------------------------------------------------------------
def _mha_kernel(*refs, nhead, head_dim, has_mask, recip_approx, exp_dtype):
    if has_mask:
        q_ref, k_ref, v_ref, mask_ref, o_ref, m_sc, l_sc, acc_sc = refs
    else:
        q_ref, k_ref, v_ref, o_ref, m_sc, l_sc, acc_sc = refs
        mask_ref = None
    # q_ref: (1, tq, D)  k_ref/v_ref: (1, tkv, D)  mask_ref: (1, tq, tkv) int8
    # o_ref: (1, tq, D)
    # m_sc/l_sc: (tq, nhead) f32   acc_sc: (tq, D) f32 (merged-head numerator)
    kb = pl.program_id(2)

    @pl.when(kb == 0)
    def _():
        m_sc[...] = jnp.full_like(m_sc, -jnp.inf)
        l_sc[...] = jnp.zeros_like(l_sc)
        acc_sc[...] = jnp.zeros_like(acc_sc)

    q = q_ref[0]                               # (tq, D)
    k = k_ref[0]                               # (tkv, D)
    v = v_ref[0]                               # (tkv, D)
    keep = (mask_ref[0] != 0) if has_mask else None
    neg = jnp.float32(-1000000000.0)

    # Per-head online softmax; heads are static lane slices of the merged D
    # axis (no HBM-level head split/merge transposes).
    # TODO(synk): for head_dim < 128 these slices cost recurring relayout work;
    # prefer head_dim multiples of 128 (v5e MXU fill) when the model allows.
    for h in range(nhead):
        lo = h * head_dim
        hi = lo + head_dim
        qh = q[:, lo:hi]                       # (tq, hd)   (scale folded into W_q)
        kh = k[:, lo:hi]                       # (tkv, hd)
        vh = v[:, lo:hi]                       # (tkv, hd)

        s = lax.dot_general(qh, kh, (((1,), (1,)), ((), ())),
                            preferred_element_type=jnp.float32)   # (tq, tkv)
        if has_mask:
            s = jnp.where(keep, s, neg)        # exact masked_fill(mask == 0, -1e9)

        m_prev = m_sc[:, h:h + 1]                                  # (tq, 1)
        m_new = jnp.maximum(m_prev, jnp.max(s, axis=-1, keepdims=True))
        alpha = jnp.exp(m_prev - m_new)
        if exp_dtype is not None:
            # Optional bf16 exp (EUP relief on v6e/v7x); max/sum/acc stay f32.
            p = jnp.exp((s - m_new).astype(exp_dtype))
            p_sum = jnp.sum(p.astype(jnp.float32), axis=-1, keepdims=True)
        else:
            p = jnp.exp(s - m_new)                                 # f32
            p_sum = jnp.sum(p, axis=-1, keepdims=True)
        l_sc[:, h:h + 1] = alpha * l_sc[:, h:h + 1] + p_sum
        # NOTE: p is cast to v's dtype (bf16 on the fast path) before the PV
        # matmul — deliberate precision trade vs. the f32 reference.
        acc_sc[:, lo:hi] = alpha * acc_sc[:, lo:hi] + lax.dot_general(
            p.astype(vh.dtype), vh, (((1,), (0,)), ((), ())),
            preferred_element_type=jnp.float32)
        m_sc[:, h:h + 1] = m_new

    @pl.when(kb == pl.num_programs(2) - 1)
    def _():
        # TODO(synk): attention dropout is identity here (eval-mode semantics).
        inv = pl.reciprocal(l_sc[...], approx=recip_approx)        # (tq, nhead)
        for h in range(nhead):
            lo = h * head_dim
            acc_sc[:, lo:lo + head_dim] = acc_sc[:, lo:lo + head_dim] * inv[:, h:h + 1]
        # single lane-dense (tq, D) store
        o_ref[0] = acc_sc[...].astype(o_ref.dtype)


def _q_index_map(off):
    return lambda b, qi, kv: (b, qi, off)


def _kv_index_map(off):
    return lambda b, qi, kv: (b, kv, off)


def _mask_index_map(b, qi, kv):
    return (b, qi, kv)


def pallas_mha_attention(q, k, v, nhead, *, d_model, mask_i8=None,
                         q_block=0, k_block=0, v_block=0,
                         out_dtype=None, tq=512, tkv=512,
                         recip_approx=True, exp_dtype=None,
                         vmem_limit_bytes=None,
                         vmem_budget_bytes=48 * 1024 * 1024):
    """Flash-style MHA on merged-head activations.

    q/k/v may alias the SAME fused (B, S, 3*D) buffer; `q_block`/`k_block`/
    `v_block` select the D-wide slab along the last axis (BlockSpec block
    index), so no jnp.split copies are needed.
    """
    B, S = q.shape[0], q.shape[1]
    L = k.shape[1]
    D = d_model
    head_dim = D // nhead
    out_dtype = out_dtype or q.dtype
    has_mask = mask_i8 is not None

    itemsize = jnp.dtype(q.dtype).itemsize
    out_itemsize = jnp.dtype(out_dtype).itemsize

    # --- tile selection (aligned divisors only) ------------------------------
    # tq: sublane dim of q/out blocks (int8 mask needs 32); tkv: lane dim of the
    # mask + sublane dim of k/v -> keep it 128-aligned.
    sub_q = max(_sublane_align(q.dtype), 32 if has_mask else 8)
    tq = _fit_tile(S, tq, align=sub_q)
    tkv = _fit_tile(L, tkv, align=128)

    # v7x megacore: ensure at least one "parallel" grid axis has extent >= 2.
    if B == 1 and S // tq == 1:
        half = _fit_tile(S, max(sub_q, tq // 2), align=sub_q)
        if half < tq:
            tq = half

    def vmem_estimate(tq_, tkv_):
        io = 2 * ((tq_ * D + 2 * tkv_ * D) * itemsize        # double-buffered q,k,v
                  + (tq_ * tkv_ if has_mask else 0)          # int8 mask block
                  + tq_ * D * out_itemsize)                  # output block
        scratch = tq_ * D * 4 + 2 * tq_ * max(nhead, 128) * 4  # acc + m/l (lane-padded)
        return io + scratch

    # Shrink tkv first, then tq, until the footprint fits the v7x-safe budget.
    while vmem_estimate(tq, tkv) > vmem_budget_bytes:
        if tkv > 128:
            new_tkv = _fit_tile(L, max(128, tkv // 2), align=128)
            if new_tkv < tkv:
                tkv = new_tkv
                continue
        if tq > sub_q:
            new_tq = _fit_tile(S, max(sub_q, tq // 2), align=sub_q)
            if new_tq < tq:
                tq = new_tq
                continue
        break

    if vmem_limit_bytes is None:
        vmem_limit_bytes = int(min(64 * 1024 * 1024,
                                   max(32 * 1024 * 1024,
                                       1.25 * vmem_estimate(tq, tkv))))

    grid = (B, S // tq, L // tkv)

    kernel = functools.partial(_mha_kernel, nhead=nhead, head_dim=head_dim,
                               has_mask=has_mask, recip_approx=recip_approx,
                               exp_dtype=exp_dtype)

    in_specs = [
        pl.BlockSpec((1, tq, D), _q_index_map(q_block)),
        pl.BlockSpec((1, tkv, D), _kv_index_map(k_block)),
        pl.BlockSpec((1, tkv, D), _kv_index_map(v_block)),
    ]
    inputs = [q, k, v]
    if has_mask:
        in_specs.append(pl.BlockSpec((1, tq, tkv), _mask_index_map))
        inputs.append(mask_i8)

    # Cost: K/V are re-streamed once per query tile; q/mask/out move once.
    n_q_tiles = S // tq
    flops = 4 * B * S * L * D                   # QK^T + PV over all heads
    transcendentals = B * nhead * S * L         # exp
    bytes_accessed = (B * S * D * itemsize
                      + n_q_tiles * 2 * B * L * D * itemsize
                      + (B * S * L if has_mask else 0)
                      + B * S * D * out_itemsize)

    return pl.pallas_call(
        kernel,
        out_shape=jax.ShapeDtypeStruct((B, S, D), out_dtype),
        grid=grid,
        in_specs=in_specs,
        out_specs=pl.BlockSpec((1, tq, D), _q_index_map(0)),
        scratch_shapes=[
            pltpu.VMEM((tq, nhead), jnp.float32),   # running max m
            pltpu.VMEM((tq, nhead), jnp.float32),   # running denom l
            pltpu.VMEM((tq, D), jnp.float32),       # running numerator (merged heads)
        ],
        compiler_params=pltpu.CompilerParams(
            dimension_semantics=("parallel", "parallel", "arbitrary"),
            vmem_limit_bytes=vmem_limit_bytes),
        cost_estimate=pl.CostEstimate(flops=flops,
                                      transcendentals=transcendentals,
                                      bytes_accessed=bytes_accessed),
    )(*inputs)


# ----------------------------------------------------------------------------
# Module wrapper
# ----------------------------------------------------------------------------
def init_multihead_attn_params(key, dim):
    """Deterministic init matching nn.Linear's U(-1/sqrt(fan_in), 1/sqrt(fan_in))."""
    bound = 1.0 / math.sqrt(dim)
    params = {}
    names = ("q", "k", "v", "out")
    keys = jax.random.split(key, 2 * len(names))
    for i, n in enumerate(names):
        params[f"w_{n}"] = jax.random.uniform(
            keys[2 * i], (dim, dim), jnp.float32, -bound, bound)
        params[f"b_{n}"] = jax.random.uniform(
            keys[2 * i + 1], (dim,), jnp.float32, -bound, bound)
    return params


def multihead_attn_forward(params, query, key, value, mask=None, *,
                           nhead=4, sum_seq=False,
                           matmul_dtype=jnp.bfloat16,
                           exp_dtype=None,
                           vmem_limit_bytes=None):
    """Equivalent of MultiheadAttn.forward (eval mode, ret_att=False)."""
    B, S, D = query.shape
    head_dim = D // nhead
    assert nhead * head_dim == D
    base_dtype = query.dtype
    proj_dtype = matmul_dtype if matmul_dtype is not None else base_dtype
    recip_approx = matmul_dtype is not None   # exact 1/l on the pure-f32 path

    # Fold 1/sqrt(head_dim) into the query projection: touches a (D, D) weight
    # once instead of scaling every (S, L) score tile inside the kernel.
    scale = 1.0 / math.sqrt(head_dim)
    w_q = params["w_q"] * scale
    b_q = params["b_q"] * scale

    lin = functools.partial(pallas_linear, matmul_dtype=matmul_dtype,
                            vmem_limit_bytes=vmem_limit_bytes)

    # TODO(synk): identity check only triggers fused QKV when the same Python
    # object is passed; equal-but-distinct arrays take the 3-projection path.
    if (query is key) and (query is value):
        # Self-attention: fused QKV projection -> activation read from HBM once.
        w_qkv = jnp.concatenate([w_q, params["w_k"], params["w_v"]], axis=0)
        b_qkv = jnp.concatenate([b_q, params["b_k"], params["b_v"]], axis=0)
        qkv = lin(query, w_qkv, b_qkv, out_dtype=proj_dtype)        # (B, S, 3D)
        if D % 128 == 0:
            # No jnp.split: attention BlockSpecs read the Q/K/V slabs straight
            # out of the fused buffer (last-axis block index 0/1/2).
            q_arr = k_arr = v_arr = qkv
            qb, kb, vb = 0, 1, 2
        else:
            # Lane-unaligned D: keep Mosaic-legal sub-blocks by splitting.
            q_arr, k_arr, v_arr = jnp.split(qkv, 3, axis=-1)
            qb = kb = vb = 0
    else:
        q_arr = lin(query, w_q, b_q, out_dtype=proj_dtype)
        k_arr = lin(key, params["w_k"], params["b_k"], out_dtype=proj_dtype)
        v_arr = lin(value, params["w_v"], params["b_v"], out_dtype=proj_dtype)
        qb = kb = vb = 0

    # Mask-free kernel variant when mask is None (no dense all-ones mask).
    mask_i8 = None if mask is None else (mask != 0).astype(jnp.int8)

    attn = pallas_mha_attention(q_arr, k_arr, v_arr, nhead, d_model=D,
                                mask_i8=mask_i8,
                                q_block=qb, k_block=kb, v_block=vb,
                                out_dtype=base_dtype,
                                recip_approx=recip_approx,
                                exp_dtype=exp_dtype,
                                vmem_limit_bytes=vmem_limit_bytes)  # (B, S, D)

    if sum_seq:
        attn = jnp.sum(attn, axis=1, keepdims=True)

    return lin(attn, params["w_out"], params["b_out"], out_dtype=base_dtype)


# ----------------------------------------------------------------------------
# Pure-JAX reference (PyTorch semantics, f32)
# ----------------------------------------------------------------------------
def reference_forward(params, query, key, value, mask, nhead):
    B, S, D = query.shape
    L = key.shape[1]
    hd = D // nhead

    def lin(x, w, b):
        return x @ w.T + b

    q = lin(query, params["w_q"], params["b_q"]).reshape(B, S, nhead, hd).transpose(0, 2, 1, 3)
    k = lin(key, params["w_k"], params["b_k"]).reshape(B, L, nhead, hd).transpose(0, 2, 1, 3)
    v = lin(value, params["w_v"], params["b_v"]).reshape(B, L, nhead, hd).transpose(0, 2, 1, 3)

    scores = jnp.einsum("bhsd,bhld->bhsl", q, k) / math.sqrt(hd)
    if mask is not None:
        scores = jnp.where(mask[:, None, :, :] == 0, -1000000000.0, scores)
    probs = jax.nn.softmax(scores, axis=-1)
    out = jnp.einsum("bhsl,bhld->bhsd", probs, v)
    out = out.transpose(0, 2, 1, 3).reshape(B, S, D)
    return lin(out, params["w_out"], params["b_out"])


# ----------------------------------------------------------------------------
# Demo
# ----------------------------------------------------------------------------
if __name__ == "__main__":
    B, S, L, D, NHEAD = 2, 8, 8, 128, 4   # D=128 so the fused no-split path is lane-aligned

    root = jax.random.PRNGKey(0)
    k_params, k_q, k_k, k_v, k_m = jax.random.split(root, 5)

    params = init_multihead_attn_params(k_params, D)
    query = jax.random.normal(k_q, (B, S, D), jnp.float32)
    key_in = jax.random.normal(k_k, (B, L, D), jnp.float32)
    value = jax.random.normal(k_v, (B, L, D), jnp.float32)
    # binary mask (B, S, L), 0 = masked out
    mask = (jax.random.uniform(k_m, (B, S, L)) > 0.2).astype(jnp.float32)

    # 1) Cross-attention, f32 matmul path (separate projections, exact recip).
    out_f32 = multihead_attn_forward(params, query, key_in, value, mask,
                                     nhead=NHEAD, matmul_dtype=None)
    out_f32 = jax.block_until_ready(out_f32)
    ref = reference_forward(params, query, key_in, value, mask, NHEAD)
    assert out_f32.shape == (B, S, D)
    assert jnp.allclose(out_f32, ref, atol=1e-2, rtol=1e-2), "f32 mismatch vs reference"

    # 2) Self-attention, fused QKV projection read in-place (no split) + bf16 MXU.
    out_bf16 = multihead_attn_forward(params, query, query, query, mask,
                                      nhead=NHEAD, matmul_dtype=jnp.bfloat16)
    out_bf16 = jax.block_until_ready(out_bf16)
    ref_self = reference_forward(params, query, query, query, mask, NHEAD)
    assert out_bf16.shape == (B, S, D)
    assert jnp.allclose(out_bf16, ref_self, atol=5e-2, rtol=5e-2), "bf16 mismatch vs reference"

    # 3) Self-attention with mask=None -> mask-free kernel variant.
    out_nomask = multihead_attn_forward(params, query, query, query, None,
                                        nhead=NHEAD, matmul_dtype=jnp.bfloat16)
    out_nomask = jax.block_until_ready(out_nomask)
    ref_nomask = reference_forward(params, query, query, query, None, NHEAD)
    assert out_nomask.shape == (B, S, D)
    assert jnp.allclose(out_nomask, ref_nomask, atol=5e-2, rtol=5e-2), "maskless mismatch vs reference"

    print("KERNEL_OK")
</pallas_src>

<mosaic_0001>
module attributes {stable_mosaic.version = 11 : i64} {
  func.func @_linear_kernel(%arg0: i32, %arg1: i32, %arg2: i32, %arg3: memref<16x128xf32, #tpu.memory_space<vmem>>, %arg4: memref<128x128xf32, #tpu.memory_space<vmem>>, %arg5: memref<1x128xf32, #tpu.memory_space<vmem>>, %arg6: memref<16x128xf32, #tpu.memory_space<vmem>>, %arg7: memref<16x128xf32, #tpu.memory_space<vmem>>) attributes {dimension_semantics = [#tpu.dimension_semantics<parallel>, #tpu.dimension_semantics<parallel>, #tpu.dimension_semantics<arbitrary>], iteration_bounds = array<i64: 1, 1, 1>, scalar_prefetch = 0 : i64, scratch_operands = 1 : i64, tpu.core_type = #tpu.core_type<tc>, window_params = [{transform_indices = @transform_0, window_bounds = array<i64: 16, 128>}, {transform_indices = @transform_1, window_bounds = array<i64: 128, 128>}, {transform_indices = @transform_2, window_bounds = array<i64: 1, 128>}, {transform_indices = @transform_3, window_bounds = array<i64: 16, 128>}]} {
    %c0_i32 = arith.constant 0 : i32
    %0 = arith.cmpi eq, %arg2, %c0_i32 : i32
    %1 = arith.extui %0 : i1 to i32
    %c0_i32_0 = arith.constant 0 : i32
    %2 = arith.cmpi ne, %1, %c0_i32_0 : i32
    scf.if %2 {
      %cst_10 = arith.constant 0.000000e+00 : f32
      %12 = vector.broadcast %cst_10 : f32 to vector<16x128xf32>
      %c0_11 = arith.constant 0 : index
      %c0_12 = arith.constant 0 : index
      %13 = vector.load %arg7[%c0_11, %c0_12] : memref<16x128xf32, #tpu.memory_space<vmem>>, vector<16x128xf32>
      tpu.vector_store %arg7[%c0_11, %c0_12], %12 {strides = array<i32>} : memref<16x128xf32, #tpu.memory_space<vmem>>, vector<16x128xf32>,
    } else {
    }
    %c0 = arith.constant 0 : index
    %c0_1 = arith.constant 0 : index
    %3 = vector.load %arg7[%c0, %c0_1] : memref<16x128xf32, #tpu.memory_space<vmem>>, vector<16x128xf32>
    %c0_2 = arith.constant 0 : index
    %c0_3 = arith.constant 0 : index
    %4 = vector.load %arg3[%c0_2, %c0_3] : memref<16x128xf32, #tpu.memory_space<vmem>>, vector<16x128xf32>
    %c0_4 = arith.constant 0 : index
    %c0_5 = arith.constant 0 : index
    %5 = vector.load %arg4[%c0_4, %c0_5] : memref<128x128xf32, #tpu.memory_space<vmem>>, vector<128x128xf32>
    %cst = arith.constant dense<0.000000e+00> : vector<16x128xf32>
    %6 = tpu.matmul %4, %5, %cst {dimension_numbers = #tpu.dot_dimension_numbers<[1], [0], [0], [1], [0, 0, 1, 1], [], []>} : vector<16x128xf32>, vector<128x128xf32>, vector<16x128xf32> -> vector<16x128xf32>
    %7 = arith.addf %3, %6 : vector<16x128xf32>
    %c0_6 = arith.constant 0 : index
    %c0_7 = arith.constant 0 : index
    %8 = vector.load %arg7[%c0_6, %c0_7] : memref<16x128xf32, #tpu.memory_space<vmem>>, vector<16x128xf32>
    tpu.vector_store %arg7[%c0_6, %c0_7], %7 {strides = array<i32>} : memref<16x128xf32, #tpu.memory_space<vmem>>, vector<16x128xf32>,
    %c0_i32_8 = arith.constant 0 : i32
    %9 = arith.cmpi eq, %arg2, %c0_i32_8 : i32
    %10 = arith.extui %9 : i1 to i32
    %c0_i32_9 = arith.constant 0 : i32
    %11 = arith.cmpi ne, %10, %c0_i32_9 : i32
    scf.if %11 {
      %c0_10 = arith.constant 0 : index
      %c0_11 = arith.constant 0 : index
      %12 = vector.load %arg7[%c0_10, %c0_11] : memref<16x128xf32, #tpu.memory_space<vmem>>, vector<16x128xf32>
      %c0_12 = arith.constant 0 : index
      %c0_13 = arith.constant 0 : index
      %13 = vector.load %arg5[%c0_12, %c0_13] : memref<1x128xf32, #tpu.memory_space<vmem>>, vector<1x128xf32>
      %14 = vector.broadcast %13 : vector<1x128xf32> to vector<16x128xf32>
      %15 = arith.addf %12, %14 : vector<16x128xf32>
      %c0_14 = arith.constant 0 : index
      %c0_15 = arith.constant 0 : index
      %16 = vector.load %arg6[%c0_14, %c0_15] : memref<16x128xf32, #tpu.memory_space<vmem>>, vector<16x128xf32>
      tpu.vector_store %arg6[%c0_14, %c0_15], %15 {strides = array<i32>} : memref<16x128xf32, #tpu.memory_space<vmem>>, vector<16x128xf32>,
    } else {
    }
    return
  }
  func.func @transform_0(%arg0: i32, %arg1: i32, %arg2: i32) -> (i32, i32) {
    %c0_i32 = arith.constant 0 : i32
    return %arg0, %arg2 : i32, i32
  }
  func.func @transform_1(%arg0: i32, %arg1: i32, %arg2: i32) -> (i32, i32) {
    %c0_i32 = arith.constant 0 : i32
    return %arg2, %arg1 : i32, i32
  }
  func.func @transform_2(%arg0: i32, %arg1: i32, %arg2: i32) -> (i32, i32) {
    %c0_i32 = arith.constant 0 : i32
    %c0_i32_0 = arith.constant 0 : i32
    return %c0_i32, %arg1 : i32, i32
  }
  func.func @transform_3(%arg0: i32, %arg1: i32, %arg2: i32) -> (i32, i32) {
    %c0_i32 = arith.constant 0 : i32
    return %arg0, %arg1 : i32, i32
  }
}

</mosaic_0001>

<llo_original>
// kernel: tpu_custom_call.1
$region0: #{tpu_custom_call.1}
  #allocation0 [shape = 'u32[]', space=smem, size = 0x4, offset = 0x4, fixed_abs, tag = 'smem constant byte address 0x4 - core index']
  #allocation1 [shape = 'u32[144,128]{1,0:T(1,128)}', space=vmem, size = 0x12000, scoped, tag = 'internal scratch']
  #allocation2 [shape = 'f32[16,128]{1,0:T(8,128)}', space=vmem, size = 0x2000, scoped, tag = 'scratch operand']
  %s0 = inlined_call_operand.hbm [shape: f32[16,128], index: 0, kind: input, shape index: {}]
  %s1 = inlined_call_operand.hbm [shape: f32[128,128], index: 1, kind: input, shape index: {}]
  %s2 = inlined_call_operand.vmem [shape: f32[1,128], index: 2, kind: input, shape index: {}]
  %s3 = inlined_call_operand.hbm [shape: f32[16,128], index: 3, kind: output, shape index: {}]
  %s4 = sld [smem:[#allocation0]]
  $region38: #{tpu_custom_call.1} parent=0
    _
  %s6 = ssub.s32 1, %s4
  %s7 = scalar_select 0, %s6, %s4
  $region1: #{tpu_custom_call.1} parent=0
    #allocation3 [shape = 'u8[8192]{0}', space=vmem, size = 0x2000, scoped, tag = 'input window, operand 0, single buffered']
    #allocation4 [shape = 's32[1]{0}', space=sflag, size = 0x4, scoped, tag = 'scoped memory for tpu_custom_call.1']
    #allocation5 [shape = 's32[1]{0}', space=sflag, size = 0x4, scoped, tag = 'scoped memory for tpu_custom_call.1']
    #allocation6 [shape = 'u8[65536]{0}', space=vmem, size = 0x10000, scoped, tag = 'input window, operand 1, single buffered']
    #allocation7 [shape = 's32[1]{0}', space=sflag, size = 0x4, scoped, tag = 'scoped memory for tpu_custom_call.1']
    #allocation8 [shape = 'u8[8192]{0}', space=vmem, size = 0x2000, scoped, tag = 'output window, operand 0, single buffered']
    %8 = vsyncpa [#allocation4], 0
    %9 = vsyncpa [#allocation7], 0
    %10 = vsyncpa [#allocation5], 0
    // Predicated region
    $region2: #{tpu_custom_call.1} parent=1 // pred_check
      _
    $region3: #{tpu_custom_call.1} parent=1 // pred_check_branch
      %12 = sbr.rel (0) target = $region5
    $region4: #{tpu_custom_call.1} parent=1 // pred_region
      %s14 = ssub.s32 256, 256
      %15 = vsyncadd [#allocation4], %s14
      %s16 = sshll.u32 [#allocation3], 4
      %s17 = int_to_ptr.vmem [resolvable:$true] %s16
      %22 = dma.hbm_to_vmem [thread:$0]  %s0, 256, %s17, [#allocation4], 128, 128, 8
    $region5: #{tpu_custom_call.1} parent=1 // pred_fallthru
      _
    // Predicated region
    $region6: #{tpu_custom_call.1} parent=1 // pred_check
      _
    $region7: #{tpu_custom_call.1} parent=1 // pred_check_branch
      %24 = sbr.rel (0) target = $region9
    $region8: #{tpu_custom_call.1} parent=1 // pred_region
      %s26 = ssub.s32 2048, 2048
      %27 = vsyncadd [#allocation7], %s26
      %s28 = sshll.u32 [#allocation6], 4
      %s29 = int_to_ptr.vmem [resolvable:$true] %s28
      %34 = dma.hbm_to_vmem [thread:$0]  %s1, 2048, %s29, [#allocation7], 128, 128, 8
    $region9: #{tpu_custom_call.1} parent=1 // pred_fallthru
      _
    // Predicated region
    $region10: #{tpu_custom_call.1} parent=1 // pred_check
      _
    $region11: #{tpu_custom_call.1} parent=1 // pred_check_branch
      %36 = sbr.rel (0) target = $region13
    $region12: #{tpu_custom_call.1} parent=1 // pred_region
      _
    $region13: #{tpu_custom_call.1} parent=1 // pred_fallthru
      _
    // Predicated region
    $region14: #{tpu_custom_call.1} parent=1 // pred_check
      _
    $region15: #{tpu_custom_call.1} parent=1 // pred_check_branch
      %38 = sbr.rel (0) target = $region17
    $region16: #{tpu_custom_call.1} parent=1 // pred_region
      %39 = dma.done [#allocation4], 256
    $region17: #{tpu_custom_call.1} parent=1 // pred_fallthru
      _
    // Predicated region
    $region18: #{tpu_custom_call.1} parent=1 // pred_check
      _
    $region19: #{tpu_custom_call.1} parent=1 // pred_check_branch
      %41 = sbr.rel (0) target = $region21
    $region20: #{tpu_custom_call.1} parent=1 // pred_region
      %42 = dma.done [#allocation7], 2048
    $region21: #{tpu_custom_call.1} parent=1 // pred_fallthru
      _
    %p43 = scmp.eq.s32.totalorder 0, 0
    // Predicated region
    $region22: #{tpu_custom_call.1} parent=1 // pred_check
      %p44 = pneg %p43
    $region23: #{tpu_custom_call.1} parent=1 // pred_check_branch
      %46 = sbr.rel (%p44) target = $region25
    $region24: #{tpu_custom_call.1} parent=1 // pred_region
      %47 = vst [vmem:[#allocation2] sm:$0xff] 0.0
      %48 = vst [vmem:[#allocation2 + $0x8] sm:$0xff] 0.0
    $region25: #{tpu_custom_call.1} parent=1 // pred_fallthru
      _
    %v49 = vld [vmem:[#allocation2] sm:$0xff]
    %v50 = vld [vmem:[#allocation2 + $0x8] sm:$0xff]
    %v51 = vld [vmem:[#allocation3] sm:$0xff]
    %v52 = vld [vmem:[#allocation3 + $0x8] sm:$0xff]
    %v53 = vld [vmem:[#allocation6] sm:$0xff]
    %v54 = vld [vmem:[#allocation6 + $0x8] sm:$0xff]
    %v55 = vld [vmem:[#allocation6 + $0x10] sm:$0xff]
    %v56 = vld [vmem:[#allocation6 + $0x18] sm:$0xff]
    %v57 = vld [vmem:[#allocation6 + $0x20] sm:$0xff]
    %v58 = vld [vmem:[#allocation6 + $0x28] sm:$0xff]
    %v59 = vld [vmem:[#allocation6 + $0x30] sm:$0xff]
    %v60 = vld [vmem:[#allocation6 + $0x38] sm:$0xff]
    %v61 = vld [vmem:[#allocation6 + $0x40] sm:$0xff]
    %v62 = vld [vmem:[#allocation6 + $0x48] sm:$0xff]
    %v63 = vld [vmem:[#allocation6 + $0x50] sm:$0xff]
    %v64 = vld [vmem:[#allocation6 + $0x58] sm:$0xff]
    %v65 = vld [vmem:[#allocation6 + $0x60] sm:$0xff]
    %v66 = vld [vmem:[#allocation6 + $0x68] sm:$0xff]
    %v67 = vld [vmem:[#allocation6 + $0x70] sm:$0xff]
    %v68 = vld [vmem:[#allocation6 + $0x78] sm:$0xff]
    %69 = vmatprep.subr.mxu0 0.0
    %70 = vmatpush1.msra.mxu0 %v53
    %71 = vmatprep.subr.mxu0 0.0
    %72 = vmatpush1.msra.mxu0 %v54
    %73 = vmatprep.subr.mxu0 0.0
    %74 = vmatpush1.msra.mxu0 %v55
    %75 = vmatprep.subr.mxu0 0.0
    %76 = vmatpush1.msra.mxu0 %v56
    %77 = vmatprep.subr.mxu0 0.0
    %78 = vmatpush1.msra.mxu0 %v57
    %79 = vmatprep.subr.mxu0 0.0
    %80 = vmatpush1.msra.mxu0 %v58
    %81 = vmatprep.subr.mxu0 0.0
    %82 = vmatpush1.msra.mxu0 %v59
    %83 = vmatprep.subr.mxu0 0.0
    %84 = vmatpush1.msra.mxu0 %v60
    %85 = vmatprep.subr.mxu0 0.0
    %86 = vmatpush1.msra.mxu0 %v61
    %87 = vmatprep.subr.mxu0 0.0
    %88 = vmatpush1.msra.mxu0 %v62
    %89 = vmatprep.subr.mxu0 0.0
    %90 = vmatpush1.msra.mxu0 %v63
    %91 = vmatprep.subr.mxu0 0.0
    %92 = vmatpush1.msra.mxu0 %v64
    %93 = vmatprep.subr.mxu0 0.0
    %94 = vmatpush1.msra.mxu0 %v65
    %95 = vmatprep.subr.mxu0 0.0
    %96 = vmatpush1.msra.mxu0 %v66
    %97 = vmatprep.subr.mxu0 0.0
    %98 = vmatpush1.msra.mxu0 %v67
    %99 = vmatprep.subr.mxu0 0.0
    %100 = vmatpush1.msra.mxu0 %v68
    %101 = vmatprep.subr.mxu0 0.0
    %102 = vmatpush1.msra.mxu0 0.0
    %103 = vmatprep.subr.mxu0 0.0
    %104 = vmatpush1.msra.mxu0 0.0
    %105 = vmatprep.subr.mxu0 0.0
    %106 = vmatpush1.msra.mxu0 0.0
    %107 = vmatprep.subr.mxu0 0.0
    %108 = vmatpush1.msra.mxu0 0.0
    %109 = vmatprep.subr.mxu0 0.0
    %110 = vmatpush1.msra.mxu0 0.0
    %111 = vmatprep.subr.mxu0 0.0
    %112 = vmatpush1.msra.mxu0 0.0
    %113 = vmatprep.subr.mxu0 0.0
    %114 = vmatpush1.msra.mxu0 0.0
    %115 = vmatprep.subr.mxu0 0.0
    %116 = vmatpush1.msra.mxu0 0.0
    %117 = vmatprep.subr.mxu0 0.0
    %118 = vmatpush1.msra.mxu0 0.0
    %119 = vmatprep.subr.mxu0 0.0
    %120 = vmatpush1.msra.mxu0 0.0
    %121 = vmatprep.subr.mxu0 0.0
    %122 = vmatpush1.msra.mxu0 0.0
    %123 = vmatprep.subr.mxu0 0.0
    %124 = vmatpush1.msra.mxu0 0.0
    %125 = vmatprep.subr.mxu0 0.0
    %126 = vmatpush1.msra.mxu0 0.0
    %127 = vmatprep.subr.mxu0 0.0
    %128 = vmatpush1.msra.mxu0 0.0
    %129 = vmatprep.subr.mxu0 0.0
    %130 = vmatpush1.msra.mxu0 0.0
    %131 = vmatprep.subr.mxu0 0.0
    %132 = vmatpush1.msra.mxu0 0.0
    %133 = vmatprep.mubr.f32.mxu0 0.0
    %134 = vmatmul.mubr.f32.gmra.mrb[0].mxu0 %v51
    %v135 = vpop.f32.mrb[0].mxu0
    %v136 = vadd.f32 0.0, %v135
    %v137 = vpop.f32.mrb[0].mxu0
    %138 = vmatprep.mubr.f32.mxu0 0.0
    %139 = vmatmul.mubr.f32.gmra.mrb[0].mxu0 %v52
    %v140 = vpop.f32.mrb[0].mxu0
    %v141 = vadd.f32 0.0, %v140
    %v142 = vpop.f32.mrb[0].mxu0
    %143 = vdwg.mxu0
    %v144 = vadd.f32 %v49, %v136
    %v145 = vadd.f32 %v50, %v141
    %146 = vst [vmem:[#allocation2] sm:$0xff] %v144
    %147 = vst [vmem:[#allocation2 + $0x8] sm:$0xff] %v145
    // Predicated region
    $region26: #{tpu_custom_call.1} parent=1 // pred_check
      %p148 = pneg %p43
    $region27: #{tpu_custom_call.1} parent=1 // pred_check_branch
      %150 = sbr.rel (%p148) target = $region29
    $region28: #{tpu_custom_call.1} parent=1 // pred_region
      %v151 = vld [vmem:[#allocation2] sm:$0xff]
      %v152 = vld [vmem:[#allocation2 + $0x8] sm:$0xff]
      %v153 = vld [vmem:[%s2] sm:$0x1]
      %v155 = vlaneseq
      %v156 = vshrl.u32 %v155, 7
      %v157 = vsub.s32 0, %v156
      %v158 = vrot.slane %v153, %v157
      %v160 = vadd.f32 %v151, %v158
      %v161 = vadd.f32 %v152, %v158
      %162 = vst [vmem:[#allocation8] sm:$0xff] %v160
      %163 = vst [vmem:[#allocation8 + $0x8] sm:$0xff] %v161
    $region29: #{tpu_custom_call.1} parent=1 // pred_fallthru
      _
    // Predicated region
    $region30: #{tpu_custom_call.1} parent=1 // pred_check
      _
    $region31: #{tpu_custom_call.1} parent=1 // pred_check_branch
      %165 = sbr.rel (0) target = $region33
    $region32: #{tpu_custom_call.1} parent=1 // pred_region
      %s167 = ssub.s32 256, 256
      %168 = vsyncadd [#allocation5], %s167
      %s169 = sshll.u32 [#allocation8], 4
      %s170 = int_to_ptr.vmem [resolvable:$true] %s169
      %175 = dma.vmem_to_hbm [thread:$0]  %s170, 256, %s3, [#allocation5], 128, 128, 8
    $region33: #{tpu_custom_call.1} parent=1 // pred_fallthru
      _
    // Predicated region
    $region34: #{tpu_custom_call.1} parent=1 // pred_check
      _
    $region35: #{tpu_custom_call.1} parent=1 // pred_check_branch
      %177 = sbr.rel (0) target = $region37
    $region36: #{tpu_custom_call.1} parent=1 // pred_region
      %178 = dma.done [#allocation5], 256
    $region37: #{tpu_custom_call.1} parent=1 // pred_fallthru
      _
    %179 = vsyncpa [#allocation4], 1
    %180 = vsyncpa [#allocation7], 1
    %181 = vsyncpa [#allocation5], 1

</llo_original>
